<compile_context>
chip_gen: v7x
topology: tpu7x:2x2x1
jax: 0.10.0
libtpu: 0.0.40
codegen_flags: <defaults>
</compile_context>

<pallas_src>
import jax
import jax.numpy as jnp
import numpy as np
from jax.experimental import pallas as pl
from jax.experimental.pallas import tpu as pltpu

EPS = 1e-5
K = 3  # all convs have kernel_size=3, stride=1


def _bn_relu(y, gamma, beta, count):
    """Training-mode BatchNorm1d + ReLU, channels-last.

    Single-pass stats (sum & sum-of-squares) over every non-channel axis, biased variance,
    eps=1e-5; gamma/beta folded into one scale/shift FMA.  gamma/beta arrive as (1, C).
    """
    red = tuple(range(y.ndim - 1))
    bshape = (1,) * (y.ndim - 1) + (-1,)
    inv_n = jnp.float32(1.0 / count)
    s = jnp.sum(y, axis=red, keepdims=True)
    ss = jnp.sum(y * y, axis=red, keepdims=True)
    mu = s * inv_n
    var = ss * inv_n - mu * mu
    scale = gamma.reshape(bshape) * jax.lax.rsqrt(var + EPS)
    shift = beta.reshape(bshape) - mu * scale
    return jnp.maximum(y * scale + shift, 0.0)


def fcn_kernel(x_ref, p_ref, w2_ref, w3_ref, out_ref):
    # x_ref : (B, L+8, n_fe)   input, channels-last, pre-padded by conv1's padding=4
    # p_ref : (R, Cmax)        packed small params: rows [0, 3*n_fe) = conv1 taps (t*n_fe+c),
    #                           then g1, be1, g2, be2, g3, be3
    # w2_ref: (3*64, 64)       conv2 weights, taps folded along the contraction dim
    # w3_ref: (3*64, n_hidden) conv3 weights, taps folded
    # out_ref: (B, n_hidden)
    B, l_pad, n_fe = x_ref.shape
    C = w2_ref.shape[1]                  # 64 hidden channels
    n_hidden = out_ref.shape[1]
    l1 = l_pad - 2                       # conv1 out length (pad 4 applied in wrapper)
    l2 = l1 + 2                          # conv2 out length (pad 2)
    l3 = l2                              # conv3 out length (pad 1)
    bn0 = 3 * n_fe                       # first BN row in the packed table

    x = x_ref[...]

    # ----- conv1: Cin = n_fe is tiny -> VPU broadcast-FMAs, no MXU, no bias -----
    y1 = jnp.zeros((B, l1, C), jnp.float32)
    for t in range(K):
        for c in range(n_fe):
            r = t * n_fe + c
            w_tc = p_ref[r:r + 1, 0:C].reshape(1, 1, C)
            y1 = y1 + x[:, t:t + l1, c:c + 1] * w_tc
    y1 = _bn_relu(y1, p_ref[bn0:bn0 + 1, 0:C], p_ref[bn0 + 1:bn0 + 2, 0:C], B * l1)

    # ----- conv2: fold 3 taps into one (B*l2, 3C) x (3C, C) matmul -----
    zer2 = jnp.zeros((B, 2, C), jnp.float32)
    h1 = jnp.concatenate([zer2, y1, zer2], axis=1)                    # (B, l1+4, C)
    lhs2 = jnp.concatenate([h1[:, t:t + l2, :] for t in range(K)], axis=-1)
    y2 = jnp.dot(lhs2.reshape(B * l2, K * C), w2_ref[...],
                 preferred_element_type=jnp.float32)                  # (B*l2, C)
    y2 = _bn_relu(y2, p_ref[bn0 + 2:bn0 + 3, 0:C], p_ref[bn0 + 3:bn0 + 4, 0:C], B * l2)

    # ----- conv3: same folded-tap matmul, output channels = n_hidden -----
    zer1 = jnp.zeros((B, 1, C), jnp.float32)
    h2 = jnp.concatenate([zer1, y2.reshape(B, l2, C), zer1], axis=1)  # (B, l2+2, C)
    lhs3 = jnp.concatenate([h2[:, t:t + l3, :] for t in range(K)], axis=-1)
    y3 = jnp.dot(lhs3.reshape(B * l3, K * C), w3_ref[...],
                 preferred_element_type=jnp.float32)                  # (B*l3, n_hidden)
    y3 = _bn_relu(y3, p_ref[bn0 + 4:bn0 + 5, 0:n_hidden],
                  p_ref[bn0 + 5:bn0 + 6, 0:n_hidden], B * l3)

    # ----- mean over the length axis -----
    out_ref[...] = jnp.mean(y3.reshape(B, l3, n_hidden), axis=1)


def fcn_forward(xb_ncl, params):
    """xb_ncl: (B, n_fe, L) float32, matching the PyTorch NCL convention."""
    B, n_fe, L = xb_ncl.shape
    C = params["w2"].shape[1]            # 64
    n_hidden = params["w3"].shape[0]
    c_max = max(C, n_hidden)

    # Layout glue only: NCL -> NLC, zero-pad L by conv1's padding=4 (L+8 stays 8-aligned).
    x_nlc = jnp.transpose(xb_ncl, (0, 2, 1)).astype(jnp.float32)
    x_pad = jnp.pad(x_nlc, ((0, 0), (4, 4), (0, 0)))

    def fold(w_oik):                     # (Cout, Cin, K) -> (K*Cin, Cout); row = t*Cin + ci
        cout, cin, k = w_oik.shape
        return jnp.transpose(w_oik, (2, 1, 0)).reshape(k * cin, cout).astype(jnp.float32)

    w1_rows = fold(params["w1"])         # (3*n_fe, 64)   conv1 taps for the VPU path
    w2_f = fold(params["w2"])            # (192, 64)
    w3_f = fold(params["w3"])            # (192, n_hidden)

    # One packed, 8-row-aligned table for all tiny per-channel params.
    # Conv biases are intentionally dropped: training-mode BN cancels them exactly.
    def lane_pad(a):
        a = a.astype(jnp.float32)
        return jnp.pad(a, ((0, 0), (0, c_max - a.shape[1])))

    rows = [lane_pad(w1_rows)]
    for name in ("g1", "be1", "g2", "be2", "g3", "be3"):
        rows.append(lane_pad(params[name].reshape(1, -1)))
    p_small = jnp.concatenate(rows, axis=0)
    p_small = jnp.pad(p_small, ((0, (-p_small.shape[0]) % 8), (0, 0)))

    return pl.pallas_call(
        fcn_kernel,
        out_shape=jax.ShapeDtypeStruct((B, n_hidden), jnp.float32),
        compiler_params=pltpu.CompilerParams(vmem_limit_bytes=32 * 1024 * 1024),
    )(x_pad, p_small, w2_f, w3_f)


def fcn_reference(xb_ncl, params):
    """Independent pure-JAX reference (lax.conv, WITH conv biases) mirroring PyTorch."""
    def conv1d(x, w_oik, b, pad):
        y = jax.lax.conv_general_dilated(
            x, w_oik, window_strides=(1,), padding=[(pad, pad)],
            dimension_numbers=("NCH", "OIH", "NCH"))
        return y + b[None, :, None]

    def bn_relu(y, g, be):
        mu = y.mean(axis=(0, 2), keepdims=True)
        var = ((y - mu) ** 2).mean(axis=(0, 2), keepdims=True)
        yh = (y - mu) * jax.lax.rsqrt(var + EPS)
        yh = yh * g[None, :, None] + be[None, :, None]
        return jnp.maximum(yh, 0.0)

    y = bn_relu(conv1d(xb_ncl, params["w1"], params["b1"], 4), params["g1"], params["be1"])
    y = bn_relu(conv1d(y, params["w2"], params["b2"], 2), params["g2"], params["be2"])
    y = bn_relu(conv1d(y, params["w3"], params["b3"], 1), params["g3"], params["be3"])
    return y.mean(axis=2)


def init_params(n_fe=2, n_hidden=64, seed=0):
    key = jax.random.PRNGKey(seed)
    k = jax.random.split(key, 12)
    params = {
        # Conv weights in PyTorch (Cout, Cin, K) convention; deterministic synthetic init.
        "w1": 0.1 * jax.random.normal(k[0], (64, n_fe, K), jnp.float32),
        "b1": 0.1 * jax.random.normal(k[1], (64,), jnp.float32),
        "w2": 0.1 * jax.random.normal(k[2], (64, 64, K), jnp.float32),
        "b2": 0.1 * jax.random.normal(k[3], (64,), jnp.float32),
        "w3": 0.1 * jax.random.normal(k[4], (n_hidden, 64, K), jnp.float32),
        "b3": 0.1 * jax.random.normal(k[5], (n_hidden,), jnp.float32),
        # BatchNorm affine params (mildly perturbed to exercise the packed-param path;
        # the reference applies the identical values).
        "g1": 1.0 + 0.1 * jax.random.normal(k[6], (64,), jnp.float32),
        "be1": 0.1 * jax.random.normal(k[7], (64,), jnp.float32),
        "g2": 1.0 + 0.1 * jax.random.normal(k[8], (64,), jnp.float32),
        "be2": 0.1 * jax.random.normal(k[9], (64,), jnp.float32),
        "g3": 1.0 + 0.1 * jax.random.normal(k[10], (n_hidden,), jnp.float32),
        "be3": 0.1 * jax.random.normal(k[11], (n_hidden,), jnp.float32),
    }
    return params


if __name__ == "__main__":
    B, n_fe, L, n_hidden = 2, 2, 16, 64
    params = init_params(n_fe=n_fe, n_hidden=n_hidden, seed=0)

    key_x = jax.random.PRNGKey(0)
    xb = jax.random.normal(jax.random.fold_in(key_x, 123), (B, n_fe, L), jnp.float32)

    out = fcn_forward(xb, params)
    out = jax.block_until_ready(out)

    ref = jax.block_until_ready(fcn_reference(xb, params))
    np.testing.assert_allclose(np.asarray(out), np.asarray(ref), rtol=1e-4, atol=1e-4)

    print("KERNEL_OK")
</pallas_src>

<mosaic_0001>
module attributes {stable_mosaic.version = 11 : i64} {
  func.func @fcn_kernel(%arg0: memref<2x24x2xf32, #tpu.memory_space<vmem>>, %arg1: memref<16x64xf32, #tpu.memory_space<vmem>>, %arg2: memref<192x64xf32, #tpu.memory_space<vmem>>, %arg3: memref<192x64xf32, #tpu.memory_space<vmem>>, %arg4: memref<2x64xf32, #tpu.memory_space<vmem>>) attributes {dimension_semantics = [], scalar_prefetch = 0 : i64, scratch_operands = 0 : i64, tpu.core_type = #tpu.core_type<tc>} {
    %c0 = arith.constant 0 : index
    %c0_0 = arith.constant 0 : index
    %c0_1 = arith.constant 0 : index
    %0 = vector.load %arg0[%c0, %c0_0, %c0_1] : memref<2x24x2xf32, #tpu.memory_space<vmem>>, vector<2x24x2xf32>
    %cst = arith.constant 0.000000e+00 : f32
    %1 = vector.broadcast %cst : f32 to vector<2x22x64xf32>
    %c0_2 = arith.constant 0 : index
    %c0_3 = arith.constant 0 : index
    %2 = vector.load %arg1[%c0_2, %c0_3] : memref<16x64xf32, #tpu.memory_space<vmem>>, vector<1x64xf32>
    %3 = vector.shape_cast %2 : vector<1x64xf32> to vector<1x1x64xf32>
    %4 = vector.extract_strided_slice %0 {offsets = [0, 0, 0], sizes = [2, 22, 1], strides = [1, 1, 1]} : vector<2x24x2xf32> to vector<2x22x1xf32>
    %5 = vector.broadcast %4 : vector<2x22x1xf32> to vector<2x22x64xf32>
    %6 = vector.broadcast %3 : vector<1x1x64xf32> to vector<2x22x64xf32>
    %7 = arith.mulf %5, %6 : vector<2x22x64xf32>
    %8 = arith.addf %1, %7 : vector<2x22x64xf32>
    %c1 = arith.constant 1 : index
    %c0_4 = arith.constant 0 : index
    %9 = vector.load %arg1[%c1, %c0_4] : memref<16x64xf32, #tpu.memory_space<vmem>>, vector<1x64xf32>
    %10 = vector.shape_cast %9 : vector<1x64xf32> to vector<1x1x64xf32>
    %11 = vector.extract_strided_slice %0 {offsets = [0, 0, 1], sizes = [2, 22, 1], strides = [1, 1, 1]} : vector<2x24x2xf32> to vector<2x22x1xf32>
    %12 = vector.broadcast %11 : vector<2x22x1xf32> to vector<2x22x64xf32>
    %13 = vector.broadcast %10 : vector<1x1x64xf32> to vector<2x22x64xf32>
    %14 = arith.mulf %12, %13 : vector<2x22x64xf32>
    %15 = arith.addf %8, %14 : vector<2x22x64xf32>
    %c2 = arith.constant 2 : index
    %c0_5 = arith.constant 0 : index
    %16 = vector.load %arg1[%c2, %c0_5] : memref<16x64xf32, #tpu.memory_space<vmem>>, vector<1x64xf32>
    %17 = vector.shape_cast %16 : vector<1x64xf32> to vector<1x1x64xf32>
    %18 = vector.extract_strided_slice %0 {offsets = [0, 1, 0], sizes = [2, 22, 1], strides = [1, 1, 1]} : vector<2x24x2xf32> to vector<2x22x1xf32>
    %19 = vector.broadcast %18 : vector<2x22x1xf32> to vector<2x22x64xf32>
    %20 = vector.broadcast %17 : vector<1x1x64xf32> to vector<2x22x64xf32>
    %21 = arith.mulf %19, %20 : vector<2x22x64xf32>
    %22 = arith.addf %15, %21 : vector<2x22x64xf32>
    %c3 = arith.constant 3 : index
    %c0_6 = arith.constant 0 : index
    %23 = vector.load %arg1[%c3, %c0_6] : memref<16x64xf32, #tpu.memory_space<vmem>>, vector<1x64xf32>
    %24 = vector.shape_cast %23 : vector<1x64xf32> to vector<1x1x64xf32>
    %25 = vector.extract_strided_slice %0 {offsets = [0, 1, 1], sizes = [2, 22, 1], strides = [1, 1, 1]} : vector<2x24x2xf32> to vector<2x22x1xf32>
    %26 = vector.broadcast %25 : vector<2x22x1xf32> to vector<2x22x64xf32>
    %27 = vector.broadcast %24 : vector<1x1x64xf32> to vector<2x22x64xf32>
    %28 = arith.mulf %26, %27 : vector<2x22x64xf32>
    %29 = arith.addf %22, %28 : vector<2x22x64xf32>
    %c4 = arith.constant 4 : index
    %c0_7 = arith.constant 0 : index
    %30 = vector.load %arg1[%c4, %c0_7] : memref<16x64xf32, #tpu.memory_space<vmem>>, vector<1x64xf32>
    %31 = vector.shape_cast %30 : vector<1x64xf32> to vector<1x1x64xf32>
    %32 = vector.extract_strided_slice %0 {offsets = [0, 2, 0], sizes = [2, 22, 1], strides = [1, 1, 1]} : vector<2x24x2xf32> to vector<2x22x1xf32>
    %33 = vector.broadcast %32 : vector<2x22x1xf32> to vector<2x22x64xf32>
    %34 = vector.broadcast %31 : vector<1x1x64xf32> to vector<2x22x64xf32>
    %35 = arith.mulf %33, %34 : vector<2x22x64xf32>
    %36 = arith.addf %29, %35 : vector<2x22x64xf32>
    %c5 = arith.constant 5 : index
    %c0_8 = arith.constant 0 : index
    %37 = vector.load %arg1[%c5, %c0_8] : memref<16x64xf32, #tpu.memory_space<vmem>>, vector<1x64xf32>
    %38 = vector.shape_cast %37 : vector<1x64xf32> to vector<1x1x64xf32>
    %39 = vector.extract_strided_slice %0 {offsets = [0, 2, 1], sizes = [2, 22, 1], strides = [1, 1, 1]} : vector<2x24x2xf32> to vector<2x22x1xf32>
    %40 = vector.broadcast %39 : vector<2x22x1xf32> to vector<2x22x64xf32>
    %41 = vector.broadcast %38 : vector<1x1x64xf32> to vector<2x22x64xf32>
    %42 = arith.mulf %40, %41 : vector<2x22x64xf32>
    %43 = arith.addf %36, %42 : vector<2x22x64xf32>
    %c6 = arith.constant 6 : index
    %c0_9 = arith.constant 0 : index
    %44 = vector.load %arg1[%c6, %c0_9] : memref<16x64xf32, #tpu.memory_space<vmem>>, vector<1x64xf32>
    %c7 = arith.constant 7 : index
    %c0_10 = arith.constant 0 : index
    %45 = vector.load %arg1[%c7, %c0_10] : memref<16x64xf32, #tpu.memory_space<vmem>>, vector<1x64xf32>
    %cst_11 = arith.constant dense<0.000000e+00> : vector<64xf32>
    %46 = vector.multi_reduction <add>, %43, %cst_11 [0, 1] : vector<2x22x64xf32> to vector<64xf32>
    %47 = vector.shape_cast %46 : vector<64xf32> to vector<1x1x64xf32>
    %48 = arith.mulf %43, %43 : vector<2x22x64xf32>
    %cst_12 = arith.constant dense<0.000000e+00> : vector<64xf32>
    %49 = vector.multi_reduction <add>, %48, %cst_12 [0, 1] : vector<2x22x64xf32> to vector<64xf32>
    %50 = vector.shape_cast %49 : vector<64xf32> to vector<1x1x64xf32>
    %cst_13 = arith.constant 0.0227272734 : f32
    %51 = vector.broadcast %cst_13 : f32 to vector<1x1x64xf32>
    %52 = arith.mulf %47, %51 : vector<1x1x64xf32>
    %cst_14 = arith.constant 0.0227272734 : f32
    %53 = vector.broadcast %cst_14 : f32 to vector<1x1x64xf32>
    %54 = arith.mulf %50, %53 : vector<1x1x64xf32>
    %55 = arith.mulf %52, %52 : vector<1x1x64xf32>
    %56 = arith.subf %54, %55 : vector<1x1x64xf32>
    %57 = vector.shape_cast %44 : vector<1x64xf32> to vector<1x1x64xf32>
    %cst_15 = arith.constant 9.99999974E-6 : f32
    %58 = vector.broadcast %cst_15 : f32 to vector<1x1x64xf32>
    %59 = arith.addf %56, %58 : vector<1x1x64xf32>
    %60 = math.rsqrt %59 : vector<1x1x64xf32>
    %61 = arith.mulf %57, %60 : vector<1x1x64xf32>
    %62 = vector.shape_cast %45 : vector<1x64xf32> to vector<1x1x64xf32>
    %63 = arith.mulf %52, %61 : vector<1x1x64xf32>
    %64 = arith.subf %62, %63 : vector<1x1x64xf32>
    %65 = vector.broadcast %61 : vector<1x1x64xf32> to vector<2x22x64xf32>
    %66 = arith.mulf %43, %65 : vector<2x22x64xf32>
    %67 = vector.broadcast %64 : vector<1x1x64xf32> to vector<2x22x64xf32>
    %68 = arith.addf %66, %67 : vector<2x22x64xf32>
    %cst_16 = arith.constant 0.000000e+00 : f32
    %69 = vector.broadcast %cst_16 : f32 to vector<2x22x64xf32>
    %70 = arith.maximumf %68, %69 : vector<2x22x64xf32>
    %cst_17 = arith.constant 0.000000e+00 : f32
    %71 = vector.broadcast %cst_17 : f32 to vector<2x2x64xf32>
    %72 = tpu.concatenate %71, %70, %71 in 1 : vector<2x2x64xf32>, vector<2x22x64xf32>, vector<2x2x64xf32> -> vector<2x26x64xf32>
    %73 = vector.extract_strided_slice %72 {offsets = [0, 0, 0], sizes = [2, 24, 64], strides = [1, 1, 1]} : vector<2x26x64xf32> to vector<2x24x64xf32>
    %74 = vector.extract_strided_slice %72 {offsets = [0, 1, 0], sizes = [2, 24, 64], strides = [1, 1, 1]} : vector<2x26x64xf32> to vector<2x24x64xf32>
    %75 = vector.extract_strided_slice %72 {offsets = [0, 2, 0], sizes = [2, 24, 64], strides = [1, 1, 1]} : vector<2x26x64xf32> to vector<2x24x64xf32>
    %76 = tpu.concatenate %73, %74, %75 in 2 : vector<2x24x64xf32>, vector<2x24x64xf32>, vector<2x24x64xf32> -> vector<2x24x192xf32>
    %77 = vector.shape_cast %76 : vector<2x24x192xf32> to vector<48x192xf32>
    %c0_18 = arith.constant 0 : index
    %c0_19 = arith.constant 0 : index
    %78 = vector.load %arg2[%c0_18, %c0_19] : memref<192x64xf32, #tpu.memory_space<vmem>>, vector<192x64xf32>
    %cst_20 = arith.constant dense<0.000000e+00> : vector<48x64xf32>
    %79 = tpu.matmul %77, %78, %cst_20 {dimension_numbers = #tpu.dot_dimension_numbers<[1], [0], [0], [1], [0, 0, 1, 1], [], []>} : vector<48x192xf32>, vector<192x64xf32>, vector<48x64xf32> -> vector<48x64xf32>
    %c8 = arith.constant 8 : index
    %c0_21 = arith.constant 0 : index
    %80 = vector.load %arg1[%c8, %c0_21] : memref<16x64xf32, #tpu.memory_space<vmem>>, vector<1x64xf32>
    %c9 = arith.constant 9 : index
    %c0_22 = arith.constant 0 : index
    %81 = vector.load %arg1[%c9, %c0_22] : memref<16x64xf32, #tpu.memory_space<vmem>>, vector<1x64xf32>
    %cst_23 = arith.constant dense<0.000000e+00> : vector<64xf32>
    %82 = vector.multi_reduction <add>, %79, %cst_23 [0] : vector<48x64xf32> to vector<64xf32>
    %83 = vector.shape_cast %82 : vector<64xf32> to vector<1x64xf32>
    %84 = arith.mulf %79, %79 : vector<48x64xf32>
    %cst_24 = arith.constant dense<0.000000e+00> : vector<64xf32>
    %85 = vector.multi_reduction <add>, %84, %cst_24 [0] : vector<48x64xf32> to vector<64xf32>
    %86 = vector.shape_cast %85 : vector<64xf32> to vector<1x64xf32>
    %cst_25 = arith.constant 0.020833334 : f32
    %87 = vector.broadcast %cst_25 : f32 to vector<1x64xf32>
    %88 = arith.mulf %83, %87 : vector<1x64xf32>
    %cst_26 = arith.constant 0.020833334 : f32
    %89 = vector.broadcast %cst_26 : f32 to vector<1x64xf32>
    %90 = arith.mulf %86, %89 : vector<1x64xf32>
    %91 = arith.mulf %88, %88 : vector<1x64xf32>
    %92 = arith.subf %90, %91 : vector<1x64xf32>
    %cst_27 = arith.constant 9.99999974E-6 : f32
    %93 = vector.broadcast %cst_27 : f32 to vector<1x64xf32>
    %94 = arith.addf %92, %93 : vector<1x64xf32>
    %95 = math.rsqrt %94 : vector<1x64xf32>
    %96 = arith.mulf %80, %95 : vector<1x64xf32>
    %97 = arith.mulf %88, %96 : vector<1x64xf32>
    %98 = arith.subf %81, %97 : vector<1x64xf32>
    %99 = vector.broadcast %96 : vector<1x64xf32> to vector<48x64xf32>
    %100 = arith.mulf %79, %99 : vector<48x64xf32>
    %101 = vector.broadcast %98 : vector<1x64xf32> to vector<48x64xf32>
    %102 = arith.addf %100, %101 : vector<48x64xf32>
    %cst_28 = arith.constant 0.000000e+00 : f32
    %103 = vector.broadcast %cst_28 : f32 to vector<48x64xf32>
    %104 = arith.maximumf %102, %103 : vector<48x64xf32>
    %cst_29 = arith.constant 0.000000e+00 : f32
    %105 = vector.broadcast %cst_29 : f32 to vector<2x1x64xf32>
    %106 = vector.shape_cast %104 : vector<48x64xf32> to vector<2x24x64xf32>
    %107 = tpu.concatenate %105, %106, %105 in 1 : vector<2x1x64xf32>, vector<2x24x64xf32>, vector<2x1x64xf32> -> vector<2x26x64xf32>
    %108 = vector.extract_strided_slice %107 {offsets = [0, 0, 0], sizes = [2, 24, 64], strides = [1, 1, 1]} : vector<2x26x64xf32> to vector<2x24x64xf32>
    %109 = vector.extract_strided_slice %107 {offsets = [0, 1, 0], sizes = [2, 24, 64], strides = [1, 1, 1]} : vector<2x26x64xf32> to vector<2x24x64xf32>
    %110 = vector.extract_strided_slice %107 {offsets = [0, 2, 0], sizes = [2, 24, 64], strides = [1, 1, 1]} : vector<2x26x64xf32> to vector<2x24x64xf32>
    %111 = tpu.concatenate %108, %109, %110 in 2 : vector<2x24x64xf32>, vector<2x24x64xf32>, vector<2x24x64xf32> -> vector<2x24x192xf32>
    %112 = vector.shape_cast %111 : vector<2x24x192xf32> to vector<48x192xf32>
    %c0_30 = arith.constant 0 : index
    %c0_31 = arith.constant 0 : index
    %113 = vector.load %arg3[%c0_30, %c0_31] : memref<192x64xf32, #tpu.memory_space<vmem>>, vector<192x64xf32>
    %cst_32 = arith.constant dense<0.000000e+00> : vector<48x64xf32>
    %114 = tpu.matmul %112, %113, %cst_32 {dimension_numbers = #tpu.dot_dimension_numbers<[1], [0], [0], [1], [0, 0, 1, 1], [], []>} : vector<48x192xf32>, vector<192x64xf32>, vector<48x64xf32> -> vector<48x64xf32>
    %c10 = arith.constant 10 : index
    %c0_33 = arith.constant 0 : index
    %115 = vector.load %arg1[%c10, %c0_33] : memref<16x64xf32, #tpu.memory_space<vmem>>, vector<1x64xf32>
    %c11 = arith.constant 11 : index
    %c0_34 = arith.constant 0 : index
    %116 = vector.load %arg1[%c11, %c0_34] : memref<16x64xf32, #tpu.memory_space<vmem>>, vector<1x64xf32>
    %cst_35 = arith.constant dense<0.000000e+00> : vector<64xf32>
    %117 = vector.multi_reduction <add>, %114, %cst_35 [0] : vector<48x64xf32> to vector<64xf32>
    %118 = vector.shape_cast %117 : vector<64xf32> to vector<1x64xf32>
    %119 = arith.mulf %114, %114 : vector<48x64xf32>
    %cst_36 = arith.constant dense<0.000000e+00> : vector<64xf32>
    %120 = vector.multi_reduction <add>, %119, %cst_36 [0] : vector<48x64xf32> to vector<64xf32>
    %121 = vector.shape_cast %120 : vector<64xf32> to vector<1x64xf32>
    %cst_37 = arith.constant 0.020833334 : f32
    %122 = vector.broadcast %cst_37 : f32 to vector<1x64xf32>
    %123 = arith.mulf %118, %122 : vector<1x64xf32>
    %cst_38 = arith.constant 0.020833334 : f32
    %124 = vector.broadcast %cst_38 : f32 to vector<1x64xf32>
    %125 = arith.mulf %121, %124 : vector<1x64xf32>
    %126 = arith.mulf %123, %123 : vector<1x64xf32>
    %127 = arith.subf %125, %126 : vector<1x64xf32>
    %cst_39 = arith.constant 9.99999974E-6 : f32
    %128 = vector.broadcast %cst_39 : f32 to vector<1x64xf32>
    %129 = arith.addf %127, %128 : vector<1x64xf32>
    %130 = math.rsqrt %129 : vector<1x64xf32>
    %131 = arith.mulf %115, %130 : vector<1x64xf32>
    %132 = arith.mulf %123, %131 : vector<1x64xf32>
    %133 = arith.subf %116, %132 : vector<1x64xf32>
    %134 = vector.broadcast %131 : vector<1x64xf32> to vector<48x64xf32>
    %135 = arith.mulf %114, %134 : vector<48x64xf32>
    %136 = vector.broadcast %133 : vector<1x64xf32> to vector<48x64xf32>
    %137 = arith.addf %135, %136 : vector<48x64xf32>
    %cst_40 = arith.constant 0.000000e+00 : f32
    %138 = vector.broadcast %cst_40 : f32 to vector<48x64xf32>
    %139 = arith.maximumf %137, %138 : vector<48x64xf32>
    %140 = vector.shape_cast %139 : vector<48x64xf32> to vector<2x24x64xf32>
    %cst_41 = arith.constant dense<0.000000e+00> : vector<2x64xf32>
    %141 = vector.multi_reduction <add>, %140, %cst_41 [1] : vector<2x24x64xf32> to vector<2x64xf32>
    %cst_42 = arith.constant 2.400000e+01 : f32
    %142 = vector.broadcast %cst_42 : f32 to vector<2x64xf32>
    %143 = arith.divf %141, %142 : vector<2x64xf32>
    %c0_43 = arith.constant 0 : index
    %c0_44 = arith.constant 0 : index
    %144 = vector.load %arg4[%c0_43, %c0_44] : memref<2x64xf32, #tpu.memory_space<vmem>>, vector<2x64xf32>
    tpu.vector_store %arg4[%c0_43, %c0_44], %143 {strides = array<i32>} : memref<2x64xf32, #tpu.memory_space<vmem>>, vector<2x64xf32>,
    return
  }
}

</mosaic_0001>

<llo_original>
// kernel: tpu_custom_call.1
$region0: #{tpu_custom_call.1}
  #allocation0 [shape = 'u32[]', space=smem, size = 0x4, offset = 0x4, fixed_abs, tag = 'smem constant byte address 0x4 - core index']
  #allocation1 [shape = 'u32[144,128]{1,0:T(1,128)}', space=vmem, size = 0x12000, scoped, tag = 'internal scratch']
  %s0 = inlined_call_operand.vmem [shape: f32[2,24,2], index: 0, kind: input, shape index: {}]
  %s1 = inlined_call_operand.vmem [shape: f32[16,64], index: 1, kind: input, shape index: {}]
  %s2 = inlined_call_operand.vmem [shape: f32[192,64], index: 2, kind: input, shape index: {}]
  %s3 = inlined_call_operand.vmem [shape: f32[192,64], index: 3, kind: input, shape index: {}]
  %s4 = inlined_call_operand.hbm [shape: f32[2,64], index: 4, kind: output, shape index: {}]
  %s5 = sld [smem:[#allocation0]]
  $region26: #{tpu_custom_call.1} parent=0
    _
  %s7 = ssub.s32 1, %s5
  %s8 = scalar_select 0, %s7, %s5
  $region1: #{tpu_custom_call.1} parent=0
    #allocation2 [shape = 'u8[1024]{0}', space=vmem, size = 0x400, scoped, tag = 'output window, operand 0, single buffered']
    #allocation3 [shape = 's32[1]{0}', space=sflag, size = 0x4, scoped, tag = 'scoped memory for tpu_custom_call.1']
    %9 = vsyncpa [#allocation3], 0
    // Predicated region
    $region2: #{tpu_custom_call.1} parent=1 // pred_check
      _
    $region3: #{tpu_custom_call.1} parent=1 // pred_check_branch
      %11 = sbr.rel (0) target = $region5
    $region4: #{tpu_custom_call.1} parent=1 // pred_region
      _
    $region5: #{tpu_custom_call.1} parent=1 // pred_fallthru
      _
    // Predicated region
    $region6: #{tpu_custom_call.1} parent=1 // pred_check
      _
    $region7: #{tpu_custom_call.1} parent=1 // pred_check_branch
      %13 = sbr.rel (0) target = $region9
    $region8: #{tpu_custom_call.1} parent=1 // pred_region
      _
    $region9: #{tpu_custom_call.1} parent=1 // pred_fallthru
      _
    // Predicated region
    $region10: #{tpu_custom_call.1} parent=1 // pred_check
      _
    $region11: #{tpu_custom_call.1} parent=1 // pred_check_branch
      %15 = sbr.rel (0) target = $region13
    $region12: #{tpu_custom_call.1} parent=1 // pred_region
      _
    $region13: #{tpu_custom_call.1} parent=1 // pred_fallthru
      _
    // Predicated region
    $region14: #{tpu_custom_call.1} parent=1 // pred_check
      _
    $region15: #{tpu_custom_call.1} parent=1 // pred_check_branch
      %17 = sbr.rel (0) target = $region17
    $region16: #{tpu_custom_call.1} parent=1 // pred_region
      _
    $region17: #{tpu_custom_call.1} parent=1 // pred_fallthru
      _
    %v18 = vld [vmem:[%s0] sm:$0xff]
    %v19 = vld [vmem:[%s0 + $0x8] sm:$0xff]
    %v20 = vld [vmem:[%s0 + $0x10] sm:$0xff]
    %v21 = vld [vmem:[%s0 + $0x18] sm:$0xff]
    %v22 = vld [vmem:[%s0 + $0x20] sm:$0xff]
    %v23 = vld [vmem:[%s0 + $0x28] sm:$0xff]
    %v24 = vld [vmem:[%s1] sm:$0x1]
    %26 = vset.pattern.permute.xlu0 0
    %27 = vperm.xlu0 %26, %v18
    %v28 = vpop.permute.xlu0 %27
    %31 = vset.pattern.permute.xlu0 0
    %32 = vperm.xlu0 %31, %v19
    %v33 = vpop.permute.xlu0 %32
    %36 = vset.pattern.permute.xlu0 0
    %37 = vperm.xlu0 %36, %v20
    %v38 = vpop.permute.xlu0 %37
    %41 = vset.pattern.permute.xlu0 0
    %42 = vperm.xlu0 %41, %v21
    %v43 = vpop.permute.xlu0 %42
    %46 = vset.pattern.permute.xlu0 0
    %47 = vperm.xlu0 %46, %v22
    %v48 = vpop.permute.xlu0 %47
    %51 = vset.pattern.permute.xlu0 0
    %52 = vperm.xlu0 %51, %v23
    %v53 = vpop.permute.xlu0 %52
    %v55 = vlaneseq
    %v56 = vshrl.u32 %v55, 7
    %v57 = vsub.s32 0, %v56
    %v58 = vrot.slane %v24, %v57
    %v59 = vmul.f32 %v28, %v58
    %v60 = vmul.f32 %v33, %v58
    %v61 = vmul.f32 %v38, %v58
    %v62 = vmul.f32 %v43, %v58
    %v63 = vmul.f32 %v48, %v58
    %v64 = vmul.f32 %v53, %v58
    %v65 = vadd.f32 %v59, 0.0
    %v66 = vadd.f32 %v60, 0.0
    %v67 = vadd.f32 %v61, 0.0
    %v68 = vadd.f32 %v62, 0.0
    %v69 = vadd.f32 %v63, 0.0
    %v70 = vadd.f32 %v64, 0.0
    %v71 = vld [vmem:[%s1 + $0x1] sm:$0x1]
    %72 = vset.pattern.permute.xlu0 1
    %73 = vperm.xlu0 %72, %v18
    %v74 = vpop.permute.xlu0 %73
    %76 = vset.pattern.permute.xlu0 1
    %77 = vperm.xlu0 %76, %v19
    %v78 = vpop.permute.xlu0 %77
    %80 = vset.pattern.permute.xlu0 1
    %81 = vperm.xlu0 %80, %v20
    %v82 = vpop.permute.xlu0 %81
    %84 = vset.pattern.permute.xlu0 1
    %85 = vperm.xlu0 %84, %v21
    %v86 = vpop.permute.xlu0 %85
    %88 = vset.pattern.permute.xlu0 1
    %89 = vperm.xlu0 %88, %v22
    %v90 = vpop.permute.xlu0 %89
    %92 = vset.pattern.permute.xlu0 1
    %93 = vperm.xlu0 %92, %v23
    %v94 = vpop.permute.xlu0 %93
    %v96 = vlaneseq
    %v97 = vshrl.u32 %v96, 7
    %v98 = vsub.s32 0, %v97
    %v99 = vrot.slane %v71, %v98
    %v100 = vmul.f32 %v74, %v99
    %v101 = vmul.f32 %v78, %v99
    %v102 = vmul.f32 %v82, %v99
    %v103 = vmul.f32 %v86, %v99
    %v104 = vmul.f32 %v90, %v99
    %v105 = vmul.f32 %v94, %v99
    %v106 = vadd.f32 %v65, %v100
    %v107 = vadd.f32 %v66, %v101
    %v108 = vadd.f32 %v67, %v102
    %v109 = vadd.f32 %v68, %v103
    %v110 = vadd.f32 %v69, %v104
    %v111 = vadd.f32 %v70, %v105
    %v112 = vld [vmem:[%s1 + $0x2] sm:$0x1]
    %v113 = vlaneseq
    %v114 = vshrl.u32 %v113, 7
    %v115 = vsub.s32 0, %v114
    %v116 = vrot.slane %v112, %v115
    %v117 = vmul.f32 %v28, %v116
    %v118 = vmul.f32 %v33, %v116
    %v119 = vmul.f32 %v38, %v116
    %v120 = vmul.f32 %v43, %v116
    %v121 = vmul.f32 %v48, %v116
    %v122 = vmul.f32 %v53, %v116
    %vm129 = vcmask 1046528
    %v130 = vrot.slane %v117, 1
    %v131 = vrot.slane %v118, 1
    %v132 = vsel %vm129, %v130, %v131
    %v133 = vrot.slane %v119, 1
    %v134 = vsel %vm129, %v131, %v133
    %v135 = vrot.slane %v120, 1
    %v136 = vrot.slane %v121, 1
    %v137 = vsel %vm129, %v135, %v136
    %v138 = vrot.slane %v122, 1
    %v139 = vsel %vm129, %v136, %v138
    %v146 = vadd.f32 %v106, %v132
    %v147 = vadd.f32 %v107, %v134
    %v148 = vadd.f32 %v108, %v133
    %v149 = vadd.f32 %v109, %v137
    %v150 = vadd.f32 %v110, %v139
    %v151 = vadd.f32 %v111, %v138
    %v152 = vld [vmem:[%s1 + $0x3] sm:$0x1]
    %v153 = vlaneseq
    %v154 = vshrl.u32 %v153, 7
    %v155 = vsub.s32 0, %v154
    %v156 = vrot.slane %v152, %v155
    %v157 = vmul.f32 %v74, %v156
    %v158 = vmul.f32 %v78, %v156
    %v159 = vmul.f32 %v82, %v156
    %v160 = vmul.f32 %v86, %v156
    %v161 = vmul.f32 %v90, %v156
    %v162 = vmul.f32 %v94, %v156
    %v169 = vrot.slane %v157, 1
    %v170 = vrot.slane %v158, 1
    %v171 = vsel %vm129, %v169, %v170
    %v172 = vrot.slane %v159, 1
    %v173 = vsel %vm129, %v170, %v172
    %v174 = vrot.slane %v160, 1
    %v175 = vrot.slane %v161, 1
    %v176 = vsel %vm129, %v174, %v175
    %v177 = vrot.slane %v162, 1
    %v178 = vsel %vm129, %v175, %v177
    %v185 = vadd.f32 %v146, %v171
    %v186 = vadd.f32 %v147, %v173
    %v187 = vadd.f32 %v148, %v172
    %v188 = vadd.f32 %v149, %v176
    %v189 = vadd.f32 %v150, %v178
    %v190 = vadd.f32 %v151, %v177
    %v191 = vld [vmem:[%s1 + $0x4] sm:$0x1]
    %v192 = vlaneseq
    %v193 = vshrl.u32 %v192, 7
    %v194 = vsub.s32 0, %v193
    %v195 = vrot.slane %v191, %v194
    %v196 = vmul.f32 %v28, %v195
    %v197 = vmul.f32 %v33, %v195
    %v198 = vmul.f32 %v38, %v195
    %v199 = vmul.f32 %v43, %v195
    %v200 = vmul.f32 %v48, %v195
    %v201 = vmul.f32 %v53, %v195
    %vm208 = vcmask 1045504
    %v209 = vrot.slane %v196, 2
    %v210 = vrot.slane %v197, 2
    %v211 = vsel %vm208, %v209, %v210
    %v212 = vrot.slane %v198, 2
    %v213 = vsel %vm208, %v210, %v212
    %v214 = vrot.slane %v199, 2
    %v215 = vrot.slane %v200, 2
    %v216 = vsel %vm208, %v214, %v215
    %v217 = vrot.slane %v201, 2
    %v218 = vsel %vm208, %v215, %v217
    %v225 = vadd.f32 %v185, %v211
    %v226 = vadd.f32 %v186, %v213
    %v227 = vadd.f32 %v187, %v212
    %v228 = vadd.f32 %v188, %v216
    %v229 = vadd.f32 %v189, %v218
    %v230 = vadd.f32 %v190, %v217
    %v231 = vld [vmem:[%s1 + $0x5] sm:$0x1]
    %v232 = vlaneseq
    %v233 = vshrl.u32 %v232, 7
    %v234 = vsub.s32 0, %v233
    %v235 = vrot.slane %v231, %v234
    %v236 = vmul.f32 %v74, %v235
    %v237 = vmul.f32 %v78, %v235
    %v238 = vmul.f32 %v82, %v235
    %v239 = vmul.f32 %v86, %v235
    %v240 = vmul.f32 %v90, %v235
    %v241 = vmul.f32 %v94, %v235
    %v248 = vrot.slane %v236, 2
    %v249 = vrot.slane %v237, 2
    %v250 = vsel %vm208, %v248, %v249
    %v251 = vrot.slane %v238, 2
    %v252 = vsel %vm208, %v249, %v251
    %v253 = vrot.slane %v239, 2
    %v254 = vrot.slane %v240, 2
    %v255 = vsel %vm208, %v253, %v254
    %v256 = vrot.slane %v241, 2
    %v257 = vsel %vm208, %v254, %v256
    %v264 = vadd.f32 %v225, %v250
    %v265 = vadd.f32 %v226, %v252
    %v266 = vadd.f32 %v227, %v251
    %v267 = vadd.f32 %v228, %v255
    %v268 = vadd.f32 %v229, %v257
    %v269 = vadd.f32 %v230, %v256
    %v270 = vld [vmem:[%s1 + $0x6] sm:$0x1]
    %v271 = vld [vmem:[%s1 + $0x7] sm:$0x1]
    %vm272 = vcmask 523264
    %v273 = vsel %vm272, %v264, 0.0
    %v274 = vsel %vm272, %v265, 0.0
    %v275 = vadd.f32 %v273, %v274
    %vm276 = vcmask 521216
    %v277 = vsel %vm276, %v266, 0.0
    %v278 = vadd.f32 %v275, %v277
    %v279 = vsel %vm272, %v267, 0.0
    %v280 = vadd.f32 %v278, %v279
    %v281 = vsel %vm272, %v268, 0.0
    %v282 = vadd.f32 %v280, %v281
    %v283 = vsel %vm276, %v269, 0.0
    %v284 = vadd.f32 %v282, %v283
    %v285 = vrot.slane %v284, 4
    %v286 = vadd.f32 %v284, %v285
    %v287 = vrot.slane %v286, 2
    %v288 = vadd.f32 %v286, %v287
    %v289 = vrot.slane %v288, 1
    %v290 = vadd.f32 %v288, %v289
    %v291 = vmul.f32 %v264, %v264
    %v292 = vmul.f32 %v265, %v265
    %v293 = vmul.f32 %v266, %v266
    %v294 = vmul.f32 %v267, %v267
    %v295 = vmul.f32 %v268, %v268
    %v296 = vmul.f32 %v269, %v269
    %v297 = vsel %vm272, %v291, 0.0
    %v298 = vsel %vm272, %v292, 0.0
    %v299 = vadd.f32 %v297, %v298
    %v300 = vsel %vm276, %v293, 0.0
    %v301 = vadd.f32 %v299, %v300
    %v302 = vsel %vm272, %v294, 0.0
    %v303 = vadd.f32 %v301, %v302
    %v304 = vsel %vm272, %v295, 0.0
    %v305 = vadd.f32 %v303, %v304
    %v306 = vsel %vm276, %v296, 0.0
    %v307 = vadd.f32 %v305, %v306
    %v308 = vrot.slane %v307, 4
    %v309 = vadd.f32 %v307, %v308
    %v310 = vrot.slane %v309, 2
    %v311 = vadd.f32 %v309, %v310
    %v312 = vrot.slane %v311, 1
    %v313 = vadd.f32 %v311, %v312
    %v314 = vmul.f32 %v290, 0.022727273
    %v315 = vmul.f32 %v313, 0.022727273
    %v316 = vmul.f32 %v314, %v314
    %v317 = vsub.f32 %v315, %v316
    %v318 = vadd.f32 %v317, 1e-05
    %v319 = vrsqrt.pop %v318
    %v320 = vmul.f32 %v270, %v319
    %v321 = vmul.f32 %v314, %v320
    %v322 = vsub.f32 %v271, %v321
    %v323 = vlaneseq
    %v324 = vshrl.u32 %v323, 7
    %v325 = vsub.s32 0, %v324
    %v326 = vrot.slane %v320, %v325
    %v327 = vmul.f32 %v264, %v326
    %v328 = vmul.f32 %v265, %v326
    %v329 = vmul.f32 %v266, %v326
    %v330 = vmul.f32 %v267, %v326
    %v331 = vmul.f32 %v268, %v326
    %v332 = vmul.f32 %v269, %v326
    %v333 = vlaneseq
    %v334 = vshrl.u32 %v333, 7
    %v335 = vsub.s32 0, %v334
    %v336 = vrot.slane %v322, %v335
    %v337 = vadd.f32 %v327, %v336
    %v338 = vadd.f32 %v328, %v336
    %v339 = vadd.f32 %v329, %v336
    %v340 = vadd.f32 %v330, %v336
    %v341 = vadd.f32 %v331, %v336
    %v342 = vadd.f32 %v332, %v336
    %v343 = vmax.f32 %v337, 0.0
    %v344 = vmax.f32 %v338, 0.0
    %v345 = vmax.f32 %v339, 0.0
    %v346 = vmax.f32 %v340, 0.0
    %v347 = vmax.f32 %v341, 0.0
    %v348 = vmax.f32 %v342, 0.0
    %vm355 = vcmask 1041408
    %v356 = vrot.slane %v343, 6
    %v357 = vrot.slane %v344, 6
    %v358 = vsel %vm355, %v356, %v357
    %v359 = vrot.slane %v345, 6
    %v360 = vsel %vm355, %v357, %v359
    %v361 = vrot.slane %v346, 6
    %v362 = vrot.slane %v347, 6
    %v363 = vsel %vm355, %v361, %v362
    %v364 = vrot.slane %v348, 6
    %v365 = vsel %vm355, %v362, %v364
    %v372 = vsel %vm355, 0.0, %v356
    %v373 = vsel %vm355, 0.0, %v361
    %v377 = vrot.slane %v372, 1
    %v378 = vrot.slane %v358, 1
    %v379 = vsel %vm129, %v377, %v378
    %v380 = vrot.slane %v360, 1
    %v381 = vsel %vm129, %v378, %v380
    %v382 = vrot.slane 0.0, 1
    %v383 = vsel %vm129, %v380, %v382
    %v384 = vrot.slane %v373, 1
    %v385 = vrot.slane %v363, 1
    %v386 = vsel %vm129, %v384, %v385
    %v387 = vrot.slane %v365, 1
    %v388 = vsel %vm129, %v385, %v387
    %v389 = vsel %vm129, %v387, %v382
    %390 = vrot.lane.b32.xlu0 %v379, 64
    %v391 = vpop.permute.xlu0 %390
    %392 = vrot.lane.b32.xlu0 %v381, 64
    %v393 = vpop.permute.xlu0 %392
    %394 = vrot.lane.b32.xlu0 %v383, 64
    %v395 = vpop.permute.xlu0 %394
    %396 = vrot.lane.b32.xlu0 %v386, 64
    %v397 = vpop.permute.xlu0 %396
    %398 = vrot.lane.b32.xlu0 %v388, 64
    %v399 = vpop.permute.xlu0 %398
    %400 = vrot.lane.b32.xlu0 %v389, 64
    %v401 = vpop.permute.xlu0 %400
    %v408 = vrot.slane %v372, 2
    %v409 = vrot.slane %v358, 2
    %v410 = vsel %vm208, %v408, %v409
    %v411 = vrot.slane %v360, 2
    %v412 = vsel %vm208, %v409, %v411
    %v413 = vrot.slane 0.0, 2
    %v414 = vsel %vm208, %v411, %v413
    %v415 = vrot.slane %v373, 2
    %v416 = vrot.slane %v363, 2
    %v417 = vsel %vm208, %v415, %v416
    %v418 = vrot.slane %v365, 2
    %v419 = vsel %vm208, %v416, %v418
    %v420 = vsel %vm208, %v418, %v413
    %v421 = vsel %vm272, %v372, %v391
    %v422 = vsel %vm272, %v358, %v393
    %v423 = vsel %vm272, %v360, %v395
    %v424 = vsel %vm272, %v373, %v397
    %v425 = vsel %vm272, %v363, %v399
    %v426 = vsel %vm272, %v365, %v401
    %v427 = vld [vmem:[%s2] sm:$0xff]
    %v428 = vld [vmem:[%s2 + $0x8] sm:$0xff]
    %v429 = vld [vmem:[%s2 + $0x10] sm:$0xff]
    %v430 = vld [vmem:[%s2 + $0x18] sm:$0xff]
    %v431 = vld [vmem:[%s2 + $0x20] sm:$0xff]
    %v432 = vld [vmem:[%s2 + $0x28] sm:$0xff]
    %v433 = vld [vmem:[%s2 + $0x30] sm:$0xff]
    %v434 = vld [vmem:[%s2 + $0x38] sm:$0xff]
    %v435 = vld [vmem:[%s2 + $0x40] sm:$0xff]
    %v436 = vld [vmem:[%s2 + $0x48] sm:$0xff]
    %v437 = vld [vmem:[%s2 + $0x50] sm:$0xff]
    %v438 = vld [vmem:[%s2 + $0x58] sm:$0xff]
    %v439 = vld [vmem:[%s2 + $0x60] sm:$0xff]
    %v440 = vld [vmem:[%s2 + $0x68] sm:$0xff]
    %v441 = vld [vmem:[%s2 + $0x70] sm:$0xff]
    %v442 = vld [vmem:[%s2 + $0x78] sm:$0xff]
    %v443 = vld [vmem:[%s2 + $0x80] sm:$0xff]
    %v444 = vld [vmem:[%s2 + $0x88] sm:$0xff]
    %v445 = vld [vmem:[%s2 + $0x90] sm:$0xff]
    %v446 = vld [vmem:[%s2 + $0x98] sm:$0xff]
    %v447 = vld [vmem:[%s2 + $0xa0] sm:$0xff]
    %v448 = vld [vmem:[%s2 + $0xa8] sm:$0xff]
    %v449 = vld [vmem:[%s2 + $0xb0] sm:$0xff]
    %v450 = vld [vmem:[%s2 + $0xb8] sm:$0xff]
    %v451 = vsel %vm272, %v410, 0
    %v453 = vsel %vm272, %v412, 0
    %v455 = vsel %vm272, %v414, 0
    %v457 = vsel %vm272, %v417, 0
    %v459 = vsel %vm272, %v419, 0
    %v461 = vsel %vm272, %v420, 0
    %463 = vmatprep.subr.mxu0 0.0
    %464 = vmatpush1.msra.mxu0 %v427
    %465 = vmatprep.subr.mxu0 0.0
    %466 = vmatpush1.msra.mxu0 %v428
    %467 = vmatprep.subr.mxu0 0.0
    %468 = vmatpush1.msra.mxu0 %v429
    %469 = vmatprep.subr.mxu0 0.0
    %470 = vmatpush1.msra.mxu0 %v430
    %471 = vmatprep.subr.mxu0 0.0
    %472 = vmatpush1.msra.mxu0 %v431
    %473 = vmatprep.subr.mxu0 0.0
    %474 = vmatpush1.msra.mxu0 %v432
    %475 = vmatprep.subr.mxu0 0.0
    %476 = vmatpush1.msra.mxu0 %v433
    %477 = vmatprep.subr.mxu0 0.0
    %478 = vmatpush1.msra.mxu0 %v434
    %479 = vmatprep.subr.mxu0 0.0
    %480 = vmatpush1.msra.mxu0 %v435
    %481 = vmatprep.subr.mxu0 0.0
    %482 = vmatpush1.msra.mxu0 %v436
    %483 = vmatprep.subr.mxu0 0.0
    %484 = vmatpush1.msra.mxu0 %v437
    %485 = vmatprep.subr.mxu0 0.0
    %486 = vmatpush1.msra.mxu0 %v438
    %487 = vmatprep.subr.mxu0 0.0
    %488 = vmatpush1.msra.mxu0 %v439
    %489 = vmatprep.subr.mxu0 0.0
    %490 = vmatpush1.msra.mxu0 %v440
    %491 = vmatprep.subr.mxu0 0.0
    %492 = vmatpush1.msra.mxu0 %v441
    %493 = vmatprep.subr.mxu0 0.0
    %494 = vmatpush1.msra.mxu0 %v442
    %495 = vmatprep.subr.mxu0 0.0
    %496 = vmatpush1.msra.mxu0 %v443
    %497 = vmatprep.subr.mxu0 0.0
    %498 = vmatpush1.msra.mxu0 %v444
    %499 = vmatprep.subr.mxu0 0.0
    %500 = vmatpush1.msra.mxu0 %v445
    %501 = vmatprep.subr.mxu0 0.0
    %502 = vmatpush1.msra.mxu0 %v446
    %503 = vmatprep.subr.mxu0 0.0
    %504 = vmatpush1.msra.mxu0 %v447
    %505 = vmatprep.subr.mxu0 0.0
    %506 = vmatpush1.msra.mxu0 %v448
    %507 = vmatprep.subr.mxu0 0.0
    %508 = vmatpush1.msra.mxu0 %v449
    %509 = vmatprep.subr.mxu0 0.0
    %510 = vmatpush1.msra.mxu0 %v450
    %511 = vmatprep.subr.mxu0 0.0
    %512 = vmatpush1.msra.mxu0 0.0
    %513 = vmatprep.subr.mxu0 0.0
    %514 = vmatpush1.msra.mxu0 0.0
    %515 = vmatprep.subr.mxu0 0.0
    %516 = vmatpush1.msra.mxu0 0.0
    %517 = vmatprep.subr.mxu0 0.0
    %518 = vmatpush1.msra.mxu0 0.0
    %519 = vmatprep.subr.mxu0 0.0
    %520 = vmatpush1.msra.mxu0 0.0
    %521 = vmatprep.subr.mxu0 0.0
    %522 = vmatpush1.msra.mxu0 0.0
    %523 = vmatprep.subr.mxu0 0.0
    %524 = vmatpush1.msra.mxu0 0.0
    %525 = vmatprep.subr.mxu0 0.0
    %526 = vmatpush1.msra.mxu0 0.0
    %527 = vmatprep.mubr.f32.mxu0 %v451
    %528 = vmatmul.mubr.f32.gmra.mrb[0].mxu0 %v421
    %v529 = vpop.f32.mrb[0].mxu0
    %v530 = vadd.f32 0.0, %v529
    %v531 = vpop.f32.mrb[0].mxu0
    %532 = vmatprep.mubr.f32.mxu0 %v453
    %533 = vmatmul.mubr.f32.gmra.mrb[0].mxu0 %v422
    %v534 = vpop.f32.mrb[0].mxu0
    %v535 = vadd.f32 0.0, %v534
    %v536 = vpop.f32.mrb[0].mxu0
    %537 = vmatprep.mubr.f32.mxu0 %v455
    %538 = vmatmul.mubr.f32.gmra.mrb[0].mxu0 %v423
    %v539 = vpop.f32.mrb[0].mxu0
    %v540 = vadd.f32 0.0, %v539
    %v541 = vpop.f32.mrb[0].mxu0
    %542 = vmatprep.mubr.f32.mxu0 %v457
    %543 = vmatmul.mubr.f32.gmra.mrb[0].mxu0 %v424
    %v544 = vpop.f32.mrb[0].mxu0
    %v545 = vadd.f32 0.0, %v544
    %v546 = vpop.f32.mrb[0].mxu0
    %547 = vmatprep.mubr.f32.mxu0 %v459
    %548 = vmatmul.mubr.f32.gmra.mrb[0].mxu0 %v425
    %v549 = vpop.f32.mrb[0].mxu0
    %v550 = vadd.f32 0.0, %v549
    %v551 = vpop.f32.mrb[0].mxu0
    %552 = vmatprep.mubr.f32.mxu0 %v461
    %553 = vmatmul.mubr.f32.gmra.mrb[0].mxu0 %v426
    %v554 = vpop.f32.mrb[0].mxu0
    %v555 = vadd.f32 0.0, %v554
    %v556 = vpop.f32.mrb[0].mxu0
    %557 = vdwg.mxu0
    %v558 = vld [vmem:[%s1 + $0x8] sm:$0x1]
    %v559 = vld [vmem:[%s1 + $0x9] sm:$0x1]
    %v560 = vsel %vm272, %v530, 0.0
    %v561 = vsel %vm272, %v535, 0.0
    %v562 = vadd.f32 %v560, %v561
    %v563 = vsel %vm272, %v540, 0.0
    %v564 = vadd.f32 %v562, %v563
    %v565 = vsel %vm272, %v545, 0.0
    %v566 = vadd.f32 %v564, %v565
    %v567 = vsel %vm272, %v550, 0.0
    %v568 = vadd.f32 %v566, %v567
    %v569 = vsel %vm272, %v555, 0.0
    %v570 = vadd.f32 %v568, %v569
    %v571 = vrot.slane %v570, 4
    %v572 = vadd.f32 %v570, %v571
    %v573 = vrot.slane %v572, 2
    %v574 = vadd.f32 %v572, %v573
    %v575 = vrot.slane %v574, 1
    %v576 = vadd.f32 %v574, %v575
    %v577 = vmul.f32 %v530, %v530
    %v578 = vmul.f32 %v535, %v535
    %v579 = vmul.f32 %v540, %v540
    %v580 = vmul.f32 %v545, %v545
    %v581 = vmul.f32 %v550, %v550
    %v582 = vmul.f32 %v555, %v555
    %v583 = vsel %vm272, %v577, 0.0
    %v584 = vsel %vm272, %v578, 0.0
    %v585 = vadd.f32 %v583, %v584
    %v586 = vsel %vm272, %v579, 0.0
    %v587 = vadd.f32 %v585, %v586
    %v588 = vsel %vm272, %v580, 0.0
    %v589 = vadd.f32 %v587, %v588
    %v590 = vsel %vm272, %v581, 0.0
    %v591 = vadd.f32 %v589, %v590
    %v592 = vsel %vm272, %v582, 0.0
    %v593 = vadd.f32 %v591, %v592
    %v594 = vrot.slane %v593, 4
    %v595 = vadd.f32 %v593, %v594
    %v596 = vrot.slane %v595, 2
    %v597 = vadd.f32 %v595, %v596
    %v598 = vrot.slane %v597, 1
    %v599 = vadd.f32 %v597, %v598
    %v600 = vmul.f32 %v576, 0.020833334
    %v601 = vmul.f32 %v599, 0.020833334
    %v602 = vmul.f32 %v600, %v600
    %v603 = vsub.f32 %v601, %v602
    %v604 = vadd.f32 %v603, 1e-05
    %v605 = vrsqrt.pop %v604
    %v606 = vmul.f32 %v558, %v605
    %v607 = vmul.f32 %v600, %v606
    %v608 = vsub.f32 %v559, %v607
    %v609 = vlaneseq
    %v610 = vshrl.u32 %v609, 7
    %v611 = vsub.s32 0, %v610
    %v612 = vrot.slane %v606, %v611
    %v613 = vmul.f32 %v530, %v612
    %v614 = vmul.f32 %v535, %v612
    %v615 = vmul.f32 %v540, %v612
    %v616 = vmul.f32 %v545, %v612
    %v617 = vmul.f32 %v550, %v612
    %v618 = vmul.f32 %v555, %v612
    %v619 = vlaneseq
    %v620 = vshrl.u32 %v619, 7
    %v621 = vsub.s32 0, %v620
    %v622 = vrot.slane %v608, %v621
    %v623 = vadd.f32 %v613, %v622
    %v624 = vadd.f32 %v614, %v622
    %v625 = vadd.f32 %v615, %v622
    %v626 = vadd.f32 %v616, %v622
    %v627 = vadd.f32 %v617, %v622
    %v628 = vadd.f32 %v618, %v622
    %v629 = vmax.f32 %v623, 0.0
    %v630 = vmax.f32 %v624, 0.0
    %v631 = vmax.f32 %v625, 0.0
    %v632 = vmax.f32 %v626, 0.0
    %v633 = vmax.f32 %v627, 0.0
    %v634 = vmax.f32 %v628, 0.0
    %vm641 = vcmask 1040384
    %v642 = vrot.slane %v629, 7
    %v643 = vrot.slane %v630, 7
    %v644 = vsel %vm641, %v642, %v643
    %v645 = vrot.slane %v631, 7
    %v646 = vsel %vm641, %v643, %v645
    %v647 = vrot.slane %v632, 7
    %v648 = vrot.slane %v633, 7
    %v649 = vsel %vm641, %v647, %v648
    %v650 = vrot.slane %v634, 7
    %v651 = vsel %vm641, %v648, %v650
    %v660 = vsel %vm641, 0.0, %v642
    %v661 = vsel %vm641, 0.0, %v647
    %v662 = vsel %vm641, %v645, 0.0
    %v663 = vsel %vm641, %v650, 0.0
    %v668 = vrot.slane %v660, 1
    %v669 = vrot.slane %v644, 1
    %v670 = vsel %vm129, %v668, %v669
    %v671 = vrot.slane %v646, 1
    %v672 = vsel %vm129, %v669, %v671
    %v673 = vrot.slane %v662, 1
    %v674 = vsel %vm129, %v671, %v673
    %v675 = vrot.slane %v661, 1
    %v676 = vrot.slane %v649, 1
    %v677 = vsel %vm129, %v675, %v676
    %v678 = vrot.slane %v651, 1
    %v679 = vsel %vm129, %v676, %v678
    %v680 = vrot.slane %v663, 1
    %v681 = vsel %vm129, %v678, %v680
    %682 = vrot.lane.b32.xlu0 %v670, 64
    %v683 = vpop.permute.xlu0 %682
    %684 = vrot.lane.b32.xlu0 %v672, 64
    %v685 = vpop.permute.xlu0 %684
    %686 = vrot.lane.b32.xlu0 %v674, 64
    %v687 = vpop.permute.xlu0 %686
    %688 = vrot.lane.b32.xlu0 %v677, 64
    %v689 = vpop.permute.xlu0 %688
    %690 = vrot.lane.b32.xlu0 %v679, 64
    %v691 = vpop.permute.xlu0 %690
    %692 = vrot.lane.b32.xlu0 %v681, 64
    %v693 = vpop.permute.xlu0 %692
    %v700 = vrot.slane %v660, 2
    %v701 = vrot.slane %v644, 2
    %v702 = vsel %vm208, %v700, %v701
    %v703 = vrot.slane %v646, 2
    %v704 = vsel %vm208, %v701, %v703
    %v705 = vrot.slane %v662, 2
    %v706 = vsel %vm208, %v703, %v705
    %v707 = vrot.slane %v661, 2
    %v708 = vrot.slane %v649, 2
    %v709 = vsel %vm208, %v707, %v708
    %v710 = vrot.slane %v651, 2
    %v711 = vsel %vm208, %v708, %v710
    %v712 = vrot.slane %v663, 2
    %v713 = vsel %vm208, %v710, %v712
    %v714 = vsel %vm272, %v660, %v683
    %v715 = vsel %vm272, %v644, %v685
    %v716 = vsel %vm272, %v646, %v687
    %v717 = vsel %vm272, %v661, %v689
    %v718 = vsel %vm272, %v649, %v691
    %v719 = vsel %vm272, %v651, %v693
    %v720 = vld [vmem:[%s3] sm:$0xff]
    %v721 = vld [vmem:[%s3 + $0x8] sm:$0xff]
    %v722 = vld [vmem:[%s3 + $0x10] sm:$0xff]
    %v723 = vld [vmem:[%s3 + $0x18] sm:$0xff]
    %v724 = vld [vmem:[%s3 + $0x20] sm:$0xff]
    %v725 = vld [vmem:[%s3 + $0x28] sm:$0xff]
    %v726 = vld [vmem:[%s3 + $0x30] sm:$0xff]
    %v727 = vld [vmem:[%s3 + $0x38] sm:$0xff]
    %v728 = vld [vmem:[%s3 + $0x40] sm:$0xff]
    %v729 = vld [vmem:[%s3 + $0x48] sm:$0xff]
    %v730 = vld [vmem:[%s3 + $0x50] sm:$0xff]
    %v731 = vld [vmem:[%s3 + $0x58] sm:$0xff]
    %v732 = vld [vmem:[%s3 + $0x60] sm:$0xff]
    %v733 = vld [vmem:[%s3 + $0x68] sm:$0xff]
    %v734 = vld [vmem:[%s3 + $0x70] sm:$0xff]
    %v735 = vld [vmem:[%s3 + $0x78] sm:$0xff]
    %v736 = vld [vmem:[%s3 + $0x80] sm:$0xff]
    %v737 = vld [vmem:[%s3 + $0x88] sm:$0xff]
    %v738 = vld [vmem:[%s3 + $0x90] sm:$0xff]
    %v739 = vld [vmem:[%s3 + $0x98] sm:$0xff]
    %v740 = vld [vmem:[%s3 + $0xa0] sm:$0xff]
    %v741 = vld [vmem:[%s3 + $0xa8] sm:$0xff]
    %v742 = vld [vmem:[%s3 + $0xb0] sm:$0xff]
    %v743 = vld [vmem:[%s3 + $0xb8] sm:$0xff]
    %v744 = vsel %vm272, %v702, 0
    %v746 = vsel %vm272, %v704, 0
    %v748 = vsel %vm272, %v706, 0
    %v750 = vsel %vm272, %v709, 0
    %v752 = vsel %vm272, %v711, 0
    %v754 = vsel %vm272, %v713, 0
    %756 = vmatprep.subr.mxu0 0.0
    %757 = vmatpush1.msra.mxu0 %v720
    %758 = vmatprep.subr.mxu0 0.0
    %759 = vmatpush1.msra.mxu0 %v721
    %760 = vmatprep.subr.mxu0 0.0
    %761 = vmatpush1.msra.mxu0 %v722
    %762 = vmatprep.subr.mxu0 0.0
    %763 = vmatpush1.msra.mxu0 %v723
    %764 = vmatprep.subr.mxu0 0.0
    %765 = vmatpush1.msra.mxu0 %v724
    %766 = vmatprep.subr.mxu0 0.0
    %767 = vmatpush1.msra.mxu0 %v725
    %768 = vmatprep.subr.mxu0 0.0
    %769 = vmatpush1.msra.mxu0 %v726
    %770 = vmatprep.subr.mxu0 0.0
    %771 = vmatpush1.msra.mxu0 %v727
    %772 = vmatprep.subr.mxu0 0.0
    %773 = vmatpush1.msra.mxu0 %v728
    %774 = vmatprep.subr.mxu0 0.0
    %775 = vmatpush1.msra.mxu0 %v729
    %776 = vmatprep.subr.mxu0 0.0
    %777 = vmatpush1.msra.mxu0 %v730
    %778 = vmatprep.subr.mxu0 0.0
    %779 = vmatpush1.msra.mxu0 %v731
    %780 = vmatprep.subr.mxu0 0.0
    %781 = vmatpush1.msra.mxu0 %v732
    %782 = vmatprep.subr.mxu0 0.0
    %783 = vmatpush1.msra.mxu0 %v733
    %784 = vmatprep.subr.mxu0 0.0
    %785 = vmatpush1.msra.mxu0 %v734
    %786 = vmatprep.subr.mxu0 0.0
    %787 = vmatpush1.msra.mxu0 %v735
    %788 = vmatprep.subr.mxu0 0.0
    %789 = vmatpush1.msra.mxu0 %v736
    %790 = vmatprep.subr.mxu0 0.0
    %791 = vmatpush1.msra.mxu0 %v737
    %792 = vmatprep.subr.mxu0 0.0
    %793 = vmatpush1.msra.mxu0 %v738
    %794 = vmatprep.subr.mxu0 0.0
    %795 = vmatpush1.msra.mxu0 %v739
    %796 = vmatprep.subr.mxu0 0.0
    %797 = vmatpush1.msra.mxu0 %v740
    %798 = vmatprep.subr.mxu0 0.0
    %799 = vmatpush1.msra.mxu0 %v741
    %800 = vmatprep.subr.mxu0 0.0
    %801 = vmatpush1.msra.mxu0 %v742
    %802 = vmatprep.subr.mxu0 0.0
    %803 = vmatpush1.msra.mxu0 %v743
    %804 = vmatprep.subr.mxu0 0.0
    %805 = vmatpush1.msra.mxu0 0.0
    %806 = vmatprep.subr.mxu0 0.0
    %807 = vmatpush1.msra.mxu0 0.0
    %808 = vmatprep.subr.mxu0 0.0
    %809 = vmatpush1.msra.mxu0 0.0
    %810 = vmatprep.subr.mxu0 0.0
    %811 = vmatpush1.msra.mxu0 0.0
    %812 = vmatprep.subr.mxu0 0.0
    %813 = vmatpush1.msra.mxu0 0.0
    %814 = vmatprep.subr.mxu0 0.0
    %815 = vmatpush1.msra.mxu0 0.0
    %816 = vmatprep.subr.mxu0 0.0
    %817 = vmatpush1.msra.mxu0 0.0
    %818 = vmatprep.subr.mxu0 0.0
    %819 = vmatpush1.msra.mxu0 0.0
    %820 = vmatprep.mubr.f32.mxu0 %v744
    %821 = vmatmul.mubr.f32.gmra.mrb[0].mxu0 %v714
    %v822 = vpop.f32.mrb[0].mxu0
    %v823 = vadd.f32 0.0, %v822
    %v824 = vpop.f32.mrb[0].mxu0
    %825 = vmatprep.mubr.f32.mxu0 %v746
    %826 = vmatmul.mubr.f32.gmra.mrb[0].mxu0 %v715
    %v827 = vpop.f32.mrb[0].mxu0
    %v828 = vadd.f32 0.0, %v827
    %v829 = vpop.f32.mrb[0].mxu0
    %830 = vmatprep.mubr.f32.mxu0 %v748
    %831 = vmatmul.mubr.f32.gmra.mrb[0].mxu0 %v716
    %v832 = vpop.f32.mrb[0].mxu0
    %v833 = vadd.f32 0.0, %v832
    %v834 = vpop.f32.mrb[0].mxu0
    %835 = vmatprep.mubr.f32.mxu0 %v750
    %836 = vmatmul.mubr.f32.gmra.mrb[0].mxu0 %v717
    %v837 = vpop.f32.mrb[0].mxu0
    %v838 = vadd.f32 0.0, %v837
    %v839 = vpop.f32.mrb[0].mxu0
    %840 = vmatprep.mubr.f32.mxu0 %v752
    %841 = vmatmul.mubr.f32.gmra.mrb[0].mxu0 %v718
    %v842 = vpop.f32.mrb[0].mxu0
    %v843 = vadd.f32 0.0, %v842
    %v844 = vpop.f32.mrb[0].mxu0
    %845 = vmatprep.mubr.f32.mxu0 %v754
    %846 = vmatmul.mubr.f32.gmra.mrb[0].mxu0 %v719
    %v847 = vpop.f32.mrb[0].mxu0
    %v848 = vadd.f32 0.0, %v847
    %v849 = vpop.f32.mrb[0].mxu0
    %850 = vdwg.mxu0
    %v851 = vld [vmem:[%s1 + $0xa] sm:$0x1]
    %v852 = vld [vmem:[%s1 + $0xb] sm:$0x1]
    %v853 = vsel %vm272, %v823, 0.0
    %v854 = vsel %vm272, %v828, 0.0
    %v855 = vadd.f32 %v853, %v854
    %v856 = vsel %vm272, %v833, 0.0
    %v857 = vadd.f32 %v855, %v856
    %v858 = vsel %vm272, %v838, 0.0
    %v859 = vadd.f32 %v857, %v858
    %v860 = vsel %vm272, %v843, 0.0
    %v861 = vadd.f32 %v859, %v860
    %v862 = vsel %vm272, %v848, 0.0
    %v863 = vadd.f32 %v861, %v862
    %v864 = vrot.slane %v863, 4
    %v865 = vadd.f32 %v863, %v864
    %v866 = vrot.slane %v865, 2
    %v867 = vadd.f32 %v865, %v866
    %v868 = vrot.slane %v867, 1
    %v869 = vadd.f32 %v867, %v868
    %v870 = vmul.f32 %v823, %v823
    %v871 = vmul.f32 %v828, %v828
    %v872 = vmul.f32 %v833, %v833
    %v873 = vmul.f32 %v838, %v838
    %v874 = vmul.f32 %v843, %v843
    %v875 = vmul.f32 %v848, %v848
    %v876 = vsel %vm272, %v870, 0.0
    %v877 = vsel %vm272, %v871, 0.0
    %v878 = vadd.f32 %v876, %v877
    %v879 = vsel %vm272, %v872, 0.0
    %v880 = vadd.f32 %v878, %v879
    %v881 = vsel %vm272, %v873, 0.0
    %v882 = vadd.f32 %v880, %v881
    %v883 = vsel %vm272, %v874, 0.0
    %v884 = vadd.f32 %v882, %v883
    %v885 = vsel %vm272, %v875, 0.0
    %v886 = vadd.f32 %v884, %v885
    %v887 = vrot.slane %v886, 4
    %v888 = vadd.f32 %v886, %v887
    %v889 = vrot.slane %v888, 2
    %v890 = vadd.f32 %v888, %v889
    %v891 = vrot.slane %v890, 1
    %v892 = vadd.f32 %v890, %v891
    %v893 = vmul.f32 %v869, 0.020833334
    %v894 = vmul.f32 %v892, 0.020833334
    %v895 = vmul.f32 %v893, %v893
    %v896 = vsub.f32 %v894, %v895
    %v897 = vadd.f32 %v896, 1e-05
    %v898 = vrsqrt.pop %v897
    %v899 = vmul.f32 %v851, %v898
    %v900 = vmul.f32 %v893, %v899
    %v901 = vsub.f32 %v852, %v900
    %v902 = vlaneseq
    %v903 = vshrl.u32 %v902, 7
    %v904 = vsub.s32 0, %v903
    %v905 = vrot.slane %v899, %v904
    %v906 = vmul.f32 %v823, %v905
    %v907 = vmul.f32 %v828, %v905
    %v908 = vmul.f32 %v833, %v905
    %v909 = vmul.f32 %v838, %v905
    %v910 = vmul.f32 %v843, %v905
    %v911 = vmul.f32 %v848, %v905
    %v912 = vlaneseq
    %v913 = vshrl.u32 %v912, 7
    %v914 = vsub.s32 0, %v913
    %v915 = vrot.slane %v901, %v914
    %v916 = vadd.f32 %v906, %v915
    %v917 = vadd.f32 %v907, %v915
    %v918 = vadd.f32 %v908, %v915
    %v919 = vadd.f32 %v909, %v915
    %v920 = vadd.f32 %v910, %v915
    %v921 = vadd.f32 %v911, %v915
    %v922 = vmax.f32 %v916, 0.0
    %v923 = vmax.f32 %v917, 0.0
    %v924 = vmax.f32 %v918, 0.0
    %v925 = vmax.f32 %v919, 0.0
    %v926 = vmax.f32 %v920, 0.0
    %v927 = vmax.f32 %v921, 0.0
    %v928 = vsel %vm272, %v922, 0.0
    %v929 = vsel %vm272, %v923, 0.0
    %v930 = vadd.f32 %v928, %v929
    %v931 = vsel %vm272, %v924, 0.0
    %v932 = vadd.f32 %v930, %v931
    %v933 = vrot.slane %v932, 4
    %v934 = vadd.f32 %v932, %v933
    %v935 = vrot.slane %v934, 2
    %v936 = vadd.f32 %v934, %v935
    %v937 = vrot.slane %v936, 1
    %v938 = vadd.f32 %v936, %v937
    %v939 = vsel %vm272, %v925, 0.0
    %v940 = vsel %vm272, %v926, 0.0
    %v941 = vadd.f32 %v939, %v940
    %v942 = vsel %vm272, %v927, 0.0
    %v943 = vadd.f32 %v941, %v942
    %v944 = vrot.slane %v943, 4
    %v945 = vadd.f32 %v943, %v944
    %v946 = vrot.slane %v945, 2
    %v947 = vadd.f32 %v945, %v946
    %v948 = vrot.slane %v947, 1
    %v949 = vadd.f32 %v947, %v948
    %v950 = vrcp.pop 24.0
    %v951 = vmul.f32 %v938, %v950
    %v952 = vmul.f32 %v949, %v950
    %vm955 = vcmask 1041409
    %v956 = vsel %vm955, %v952, %v951
    %vm958 = vcmask 517120
    %959 = vst.msk [vmem:[#allocation2] sm:$0x3] %vm958, %v956
    // Predicated region
    $region18: #{tpu_custom_call.1} parent=1 // pred_check
      _
    $region19: #{tpu_custom_call.1} parent=1 // pred_check_branch
      %961 = sbr.rel (0) target = $region21
    $region20: #{tpu_custom_call.1} parent=1 // pred_region
      %s963 = ssub.s32 32, 32
      %964 = vsyncadd [#allocation3], %s963
      %s966 = sshll.u32 [#allocation2], 4
      %s967 = int_to_ptr.vmem [resolvable:$true] %s966
      %969 = dma.vmem_to_hbm [thread:$0]  %s967, 32, %s4, [#allocation3]
    $region21: #{tpu_custom_call.1} parent=1 // pred_fallthru
      _
    // Predicated region
    $region22: #{tpu_custom_call.1} parent=1 // pred_check
      _
    $region23: #{tpu_custom_call.1} parent=1 // pred_check_branch
      %971 = sbr.rel (0) target = $region25
    $region24: #{tpu_custom_call.1} parent=1 // pred_region
      %972 = dma.done [#allocation3], 32
    $region25: #{tpu_custom_call.1} parent=1 // pred_fallthru
      _
    %973 = vsyncpa [#allocation3], 1

</llo_original>
